<compile_context>
chip_gen: v5e
topology: v5e:2x2
jax: 0.10.0
libtpu: 0.0.40
codegen_flags: <defaults>
</compile_context>

<pallas_src>
import functools

import jax
import jax.numpy as jnp
from jax.experimental import pallas as pl
from jax.experimental.pallas import tpu as pltpu


def _binaural_mlp_kernel(x_ref, w1p_ref, b1p_ref, w2p_ref, b2_ref, o_ref):
    """One packed batch tile.

    x_ref:   (R, g*IN)   lane-dense: packed row r holds batch rows g*r .. g*r+g-1
    w1p_ref: (g*IN, g*H) block-diagonal kron(I_g, W1^T), VMEM-resident
    b1p_ref: (1, g*H)    b1 tiled g times
    w2p_ref: (g*H, g)    block-diagonal kron(I_g, w2^T)
    b2_ref:  (1,)        linear2 bias, SMEM scalar
    o_ref:   (R, g)      packed outputs; (r, j) is batch element g*r + j
    """
    # linear1 on the packed layout: one MXU matmul, lane-dense result.
    h = jnp.dot(x_ref[...], w1p_ref[...], preferred_element_type=jnp.float32)
    h = h + b1p_ref[...]                                   # (R, g*H)

    # Sigmoid: exp on the EUP; approx reciprocal also routes to the EUP slot.
    a = pl.reciprocal(1.0 + jnp.exp(-h), approx=True)      # (R, g*H)

    # linear2: small block-diagonal MXU matmul -> packed (R, g) outputs.
    out = jnp.dot(a, w2p_ref[...], preferred_element_type=jnp.float32) + b2_ref[0]
    o_ref[...] = out.astype(o_ref.dtype)


def _round_up(n, m):
    return ((n + m - 1) // m) * m


def _cdiv(a, b):
    return -(-a // b)


def _lane_group(in_dim):
    """How many batch rows pack into one 128-lane row (1 if in_dim doesn't divide 128)."""
    return 128 // in_dim if (in_dim <= 128 and 128 % in_dim == 0) else 1


def _sublane_multiple(itemsize):
    """Sublane packing granularity per dtype width (f32: 8, bf16: 16, int8/fp8: 32)."""
    return {4: 8, 2: 16, 1: 32}.get(itemsize, 8)


def _tile_vmem_bytes(tile_b, g, in_dim, hidden, itemsize):
    """Lane-padded VMEM footprint of one grid step (double-buffered IO + f32 temps)."""
    rows = tile_b // g
    x_buf = rows * _round_up(g * in_dim, 128) * itemsize     # streamed x block
    o_buf = rows * 128 * itemsize                            # (rows, g) padded to 128 lanes
    tmp = rows * _round_up(g * hidden, 128) * 4              # f32 h / sigmoid temporaries
    return 2 * x_buf + 2 * o_buf + 3 * tmp


def _choose_tile_b(batch, g, in_dim, hidden, itemsize, target):
    """Pick the batch-tile size: grow toward `target`, respect padded-VMEM budget,
    never over-pad small batches, and keep >= 4 grid steps for large batches (v7x)."""
    gran = _sublane_multiple(itemsize) * g          # packing + sublane granularity
    b_ceil = _round_up(max(batch, 1), gran)
    budget = 24 * 1024 * 1024                       # conservative across v5e/v6e/v7x

    tile = _round_up(min(max(target, gran), 32768), gran)
    while tile > gran and _tile_vmem_bytes(tile, g, in_dim, hidden, itemsize) > budget:
        tile = max(gran, _round_up(tile // 2, gran))

    # Don't pad a small batch up to a huge tile.
    tile = min(tile, b_ceil)

    # v7x megacore: for big batches keep >= 4 grid steps (>= 2 per TensorCore),
    # but don't shrink below ~2K rows per tile for it.
    if b_ceil > 4 * 2048:
        while tile > 2048 and _cdiv(b_ceil, tile) < 4:
            tile = max(gran, _round_up(tile // 2, gran))
    return tile


@functools.partial(jax.jit, static_argnames=("tile_b",))
def binaural_forward(x, w1, b1, w2, b2, *, tile_b=16384):
    """Fused forward pass of BinauralNeuralNetwork (PyTorch parameter layout).

    x: (B, input_size); w1: (hidden, input_size); b1: (hidden,);
    w2: (1, hidden); b2: (1,).  Returns (B, 1) = sigmoid(x @ w1.T + b1) @ w2.T + b2.
    `tile_b` is a target rows-per-grid-step hint (auto-adjusted for VMEM/megacore).
    """
    batch, in_dim = x.shape
    hidden = w1.shape[0]
    itemsize = jnp.dtype(x.dtype).itemsize

    g = _lane_group(in_dim)
    tile = _choose_tile_b(batch, g, in_dim, hidden, itemsize, tile_b)
    b_pad = _round_up(batch, tile)
    num_tiles = b_pad // tile
    if b_pad != batch:
        x = jnp.pad(x, ((0, b_pad - batch), (0, 0)))

    # Lane-dense packing of x: contiguous reshape, free in HBM.
    xp = x.reshape(b_pad // g, g * in_dim)
    rows_per_tile = tile // g

    # Block-diagonal packed weights so both layers consume the packed layout.
    eye = jnp.eye(g, dtype=w1.dtype)
    w1p = jnp.kron(eye, jnp.transpose(w1))            # (g*in, g*hidden)
    b1p = jnp.tile(b1, g).reshape(1, g * hidden)      # (1, g*hidden)
    w2p = jnp.kron(eye, jnp.transpose(w2))            # (g*hidden, g)
    b2s = b2.reshape(1)

    # Explicit scoped-VMEM limit: covers v5e's smaller default, stays < v7x physical.
    est = _tile_vmem_bytes(tile, g, in_dim, hidden, itemsize)
    vmem_limit = int(min(56 * 2**20, max(32 * 2**20, est + 16 * 2**20)))

    out_packed = pl.pallas_call(
        _binaural_mlp_kernel,
        out_shape=jax.ShapeDtypeStruct((b_pad // g, g), x.dtype),
        grid=(num_tiles,),
        in_specs=[
            # Streamed, lane-dense x tiles (double-buffered by Pallas).  A third
            # buffer (pipeline_mode=pl.Buffered(3)) only pays off for tiny grids
            # with exposed DMA in a trace; default depth kept.
            pl.BlockSpec((rows_per_tile, g * in_dim), lambda i: (i, 0)),
            pl.BlockSpec((g * in_dim, g * hidden), lambda i: (0, 0)),   # w1p resident
            pl.BlockSpec((1, g * hidden), lambda i: (0, 0)),            # b1p resident
            pl.BlockSpec((g * hidden, g), lambda i: (0, 0)),            # w2p resident
            pl.BlockSpec(memory_space=pltpu.MemorySpace.SMEM),          # b2 scalar
        ],
        out_specs=pl.BlockSpec((rows_per_tile, g), lambda i: (i, 0)),
        compiler_params=pltpu.CompilerParams(
            dimension_semantics=("parallel",),
            vmem_limit_bytes=vmem_limit,
        ),
    )(xp, w1p, b1p, w2p, b2s)

    # Free layout plumbing back to the PyTorch (B, 1) output shape.
    return out_packed.reshape(b_pad, 1)[:batch]


def init_params(key, input_size, hidden_size, dtype=jnp.float32):
    """PyTorch nn.Linear-style uniform(-1/sqrt(fan_in), 1/sqrt(fan_in)) init."""
    k1, k2, k3, k4 = jax.random.split(key, 4)
    bound1 = 1.0 / (input_size ** 0.5)
    bound2 = 1.0 / (hidden_size ** 0.5)
    w1 = jax.random.uniform(k1, (hidden_size, input_size), dtype, -bound1, bound1)
    b1 = jax.random.uniform(k2, (hidden_size,), dtype, -bound1, bound1)
    w2 = jax.random.uniform(k3, (1, hidden_size), dtype, -bound2, bound2)
    b2 = jax.random.uniform(k4, (1,), dtype, -bound2, bound2)
    return w1, b1, w2, b2


def _reference(x, w1, b1, w2, b2):
    h = x @ w1.T + b1
    a = 1.0 / (1.0 + jnp.exp(-h))
    return a @ w2.T + b2


if __name__ == "__main__":
    # TODO(synk): the module's cached hidden activations (self.temp / self.linearact
    # for getHiddenActivations) are not returned; add a second kernel output if needed.
    input_size, hidden_size = 16, 32
    key = jax.random.PRNGKey(0)
    kx1, kx2, kp = jax.random.split(key, 3)
    w1, b1, w2, b2 = init_params(kp, input_size, hidden_size)

    # Tolerance is 2e-3 because the sigmoid uses the EUP approximate reciprocal.
    tol = 2e-3

    # Small batch -> single packed tile (batch padded up to the packing granule).
    x_small = jax.random.normal(kx1, (20, input_size), jnp.float32)
    out_small = binaural_forward(x_small, w1, b1, w2, b2)
    jax.block_until_ready(out_small)
    assert out_small.shape == (20, 1)
    assert jnp.allclose(out_small, _reference(x_small, w1, b1, w2, b2),
                        atol=tol, rtol=tol)

    # Larger batch with a small explicit tile target -> multi-tile pipelined grid.
    x_big = jax.random.normal(kx2, (300, input_size), jnp.float32)
    out_big = binaural_forward(x_big, w1, b1, w2, b2, tile_b=128)
    jax.block_until_ready(out_big)
    assert out_big.shape == (300, 1)
    assert jnp.allclose(out_big, _reference(x_big, w1, b1, w2, b2),
                        atol=tol, rtol=tol)

    print("KERNEL_OK")
</pallas_src>

<mosaic_0001>
module attributes {stable_mosaic.version = 11 : i64} {
  func.func @_binaural_mlp_kernel(%arg0: i32, %arg1: memref<8x128xf32, #tpu.memory_space<vmem>>, %arg2: memref<128x256xf32, #tpu.memory_space<vmem>>, %arg3: memref<1x256xf32, #tpu.memory_space<vmem>>, %arg4: memref<256x8xf32, #tpu.memory_space<vmem>>, %arg5: memref<1xf32, #tpu.memory_space<smem>>, %arg6: memref<8x8xf32, #tpu.memory_space<vmem>>) attributes {dimension_semantics = [#tpu.dimension_semantics<parallel>], iteration_bounds = array<i64: 1>, scalar_prefetch = 0 : i64, scratch_operands = 0 : i64, tpu.core_type = #tpu.core_type<tc>, window_params = [{transform_indices = @transform_0, window_bounds = array<i64: 8, 128>}, {pipeline_mode = #tpu.pipeline_mode<synchronous>, transform_indices = @transform_1, window_bounds = array<i64: 128, 256>}, {pipeline_mode = #tpu.pipeline_mode<synchronous>, transform_indices = @transform_2, window_bounds = array<i64: 1, 256>}, {pipeline_mode = #tpu.pipeline_mode<synchronous>, transform_indices = @transform_3, window_bounds = array<i64: 256, 8>}, {transform_indices = @transform_4, window_bounds = array<i64: 1>}, {transform_indices = @transform_5, window_bounds = array<i64: 8, 8>}]} {
    %c0 = arith.constant 0 : index
    %c0_0 = arith.constant 0 : index
    %0 = vector.load %arg1[%c0, %c0_0] : memref<8x128xf32, #tpu.memory_space<vmem>>, vector<8x128xf32>
    %c0_1 = arith.constant 0 : index
    %c0_2 = arith.constant 0 : index
    %1 = vector.load %arg2[%c0_1, %c0_2] : memref<128x256xf32, #tpu.memory_space<vmem>>, vector<128x256xf32>
    %cst = arith.constant dense<0.000000e+00> : vector<8x256xf32>
    %2 = tpu.matmul %0, %1, %cst {dimension_numbers = #tpu.dot_dimension_numbers<[1], [0], [0], [1], [0, 0, 1, 1], [], []>} : vector<8x128xf32>, vector<128x256xf32>, vector<8x256xf32> -> vector<8x256xf32>
    %c0_3 = arith.constant 0 : index
    %c0_4 = arith.constant 0 : index
    %3 = vector.load %arg3[%c0_3, %c0_4] : memref<1x256xf32, #tpu.memory_space<vmem>>, vector<1x256xf32>
    %4 = vector.broadcast %3 : vector<1x256xf32> to vector<8x256xf32>
    %5 = arith.addf %2, %4 : vector<8x256xf32>
    %cst_5 = arith.constant 0.000000e+00 : f32
    %6 = vector.broadcast %cst_5 : f32 to vector<8x256xf32>
    %7 = arith.subf %6, %5 : vector<8x256xf32>
    %8 = math.exp %7 : vector<8x256xf32>
    %cst_6 = arith.constant 1.000000e+00 : f32
    %9 = vector.broadcast %cst_6 : f32 to vector<8x256xf32>
    %10 = arith.addf %9, %8 : vector<8x256xf32>
    %11 = tpu.reciprocal %10 {approx = true} : vector<8x256xf32> -> vector<8x256xf32>
    %c0_7 = arith.constant 0 : index
    %c0_8 = arith.constant 0 : index
    %12 = vector.load %arg4[%c0_7, %c0_8] : memref<256x8xf32, #tpu.memory_space<vmem>>, vector<256x8xf32>
    %cst_9 = arith.constant dense<0.000000e+00> : vector<8x8xf32>
    %13 = tpu.matmul %11, %12, %cst_9 {dimension_numbers = #tpu.dot_dimension_numbers<[1], [0], [0], [1], [0, 0, 1, 1], [], []>} : vector<8x256xf32>, vector<256x8xf32>, vector<8x8xf32> -> vector<8x8xf32>
    %c0_10 = arith.constant 0 : index
    %14 = memref.load %arg5[%c0_10] : memref<1xf32, #tpu.memory_space<smem>>
    %15 = vector.broadcast %14 : f32 to vector<8x8xf32>
    %16 = arith.addf %13, %15 : vector<8x8xf32>
    %c0_11 = arith.constant 0 : index
    %c0_12 = arith.constant 0 : index
    %17 = vector.load %arg6[%c0_11, %c0_12] : memref<8x8xf32, #tpu.memory_space<vmem>>, vector<8x8xf32>
    tpu.vector_store %arg6[%c0_11, %c0_12], %16 {strides = array<i32>} : memref<8x8xf32, #tpu.memory_space<vmem>>, vector<8x8xf32>,
    return
  }
  func.func @transform_0(%arg0: i32) -> (i32, i32) {
    %c0_i32 = arith.constant 0 : i32
    %c0_i32_0 = arith.constant 0 : i32
    return %arg0, %c0_i32 : i32, i32
  }
  func.func @transform_1(%arg0: i32) -> (i32, i32) {
    %c0_i32 = arith.constant 0 : i32
    %c0_i32_0 = arith.constant 0 : i32
    %c0_i32_1 = arith.constant 0 : i32
    return %c0_i32, %c0_i32_0 : i32, i32
  }
  func.func @transform_2(%arg0: i32) -> (i32, i32) {
    %c0_i32 = arith.constant 0 : i32
    %c0_i32_0 = arith.constant 0 : i32
    %c0_i32_1 = arith.constant 0 : i32
    return %c0_i32, %c0_i32_0 : i32, i32
  }
  func.func @transform_3(%arg0: i32) -> (i32, i32) {
    %c0_i32 = arith.constant 0 : i32
    %c0_i32_0 = arith.constant 0 : i32
    %c0_i32_1 = arith.constant 0 : i32
    return %c0_i32, %c0_i32_0 : i32, i32
  }
  func.func @transform_4(%arg0: i32) -> i32 {
    %c0_i32 = arith.constant 0 : i32
    %c0_i32_0 = arith.constant 0 : i32
    return %c0_i32 : i32
  }
  func.func @transform_5(%arg0: i32) -> (i32, i32) {
    %c0_i32 = arith.constant 0 : i32
    %c0_i32_0 = arith.constant 0 : i32
    return %arg0, %c0_i32 : i32, i32
  }
}

</mosaic_0001>

<llo_original>
// kernel: tile.9
$region0: #{tile.9}
  %s0 = inlined_call_operand.vmem [shape: f32[8,32], index: 0, kind: input, shape index: {}]
  %s1 = inlined_call_operand.vmem [shape: f32[1,256], index: 1, kind: output, shape index: {}]
  $region1: #{tile.9} parent=0
    #allocation0 [shape = 'u8[8192]{0}', space=vmem, size = 0x2000, scoped, tag = 'scoped mem for output reshape']
    %s2 = smov 3
    %v3 = vld [vmem:[%s0] ss:$4 sm:%s2]
    %vm4 = vcmask 261120
    %5 = vst.msk [vmem:[#allocation0] ss:$8 sm:$0x3] %vm4, %v3
    %s6 = scalar_lea.vmem %s0, 3
    %s7 = smov 3
    %v8 = vld [vmem:[%s6] ss:$4 sm:%s7]
    %9 = vrot.lane.b32.xlu0 %v8, 96
    %v10 = vpop.permute.xlu0 %9
    %vm11 = vcmask 1048320
    %12 = vst.msk [vmem:[#allocation0] ss:$8 sm:$0x3] %vm11, %v10
    %s13 = scalar_lea.vmem %s0, 2
    %s14 = smov 3
    %v15 = vld [vmem:[%s13] ss:$4 sm:%s14]
    %16 = vrot.lane.b32.xlu0 %v15, 64
    %v17 = vpop.permute.xlu0 %16
    %vm18 = vcmask 785920
    %19 = vst.msk [vmem:[#allocation0] ss:$8 sm:$0x3] %vm18, %v17
    %s20 = scalar_lea.vmem %s0, 1
    %s21 = smov 3
    %v22 = vld [vmem:[%s20] ss:$4 sm:%s21]
    %23 = vrot.lane.b32.xlu0 %v22, 32
    %v24 = vpop.permute.xlu0 %23
    %vm25 = vcmask 523520
    %26 = vst.msk [vmem:[#allocation0] ss:$8 sm:$0x3] %vm25, %v24
    %s28 = ssub.s32 2, 1
    %v29 = vld [vmem:[#allocation0] sm:%s28]
    %s31 = ssub.s32 2, 1
    %32 = vst [vmem:[%s1] sm:%s31] %v29
    %s33 = scalar_lea.vmem [#allocation0], 8
    %v34 = vld [vmem:[%s33] sm:%s28]
    %s36 = ssub.s32 2, 1
    %s37 = scalar_lea.vmem %s1, 1
    %38 = vst [vmem:[%s37] sm:%s36] %v34

// kernel: binaural_forward.1
$region0: #{binaural_forward.1}
  #allocation0 [shape = 'u32[]', space=smem, size = 0x4, offset = 0x4, fixed_abs, tag = 'smem constant byte address 0x4 - core index']
  #allocation1 [shape = 'u32[72,128]{1,0:T(1,128)}', space=vmem, size = 0x9000, scoped, tag = 'internal scratch']
  #allocation2 [shape = 'f32[1]{0:T(128)S(6)}', space=smem, size = 0x200, scoped, tag = 'scoped memory for binaural_forward.1']
  %s0 = inlined_call_operand.vmem [shape: f32[8,128], index: 0, kind: input, shape index: {}]
  %s1 = inlined_call_operand.vmem [shape: f32[128,256], index: 1, kind: input, shape index: {}]
  %s2 = inlined_call_operand.vmem [shape: f32[1,256], index: 2, kind: input, shape index: {}]
  %s3 = inlined_call_operand.vmem [shape: f32[256,8], index: 3, kind: input, shape index: {}]
  %s4 = inlined_call_operand.<no memory space> [shape: f32[1], index: 4, kind: input, shape index: {}]
  %s5 = inlined_call_operand.vmem [shape: f32[8,8], index: 5, kind: output, shape index: {}]
  %s6 = sld [smem:[#allocation0]]
  $region30: #{binaural_forward.1} parent=0
    _
  %s8 = ssub.s32 1, %s6
  %s9 = scalar_select 0, %s8, %s6
  %10 = sst [smem:[#allocation2]] %s4
  // Predicated region
  $region2: #{binaural_forward.1} parent=0 // pred_check
    _
  $region3: #{binaural_forward.1} parent=0 // pred_check_branch
    %12 = sbr.rel (0) target = $region5
  $region4: #{binaural_forward.1} parent=0 // pred_region
    _
  $region5: #{binaural_forward.1} parent=0 // pred_fallthru
    _
  // Predicated region
  $region6: #{binaural_forward.1} parent=0 // pred_check
    _
  $region7: #{binaural_forward.1} parent=0 // pred_check_branch
    %14 = sbr.rel (0) target = $region9
  $region8: #{binaural_forward.1} parent=0 // pred_region
    _
  $region9: #{binaural_forward.1} parent=0 // pred_fallthru
    _
  // Predicated region
  $region10: #{binaural_forward.1} parent=0 // pred_check
    _
  $region11: #{binaural_forward.1} parent=0 // pred_check_branch
    %16 = sbr.rel (0) target = $region13
  $region12: #{binaural_forward.1} parent=0 // pred_region
    _
  $region13: #{binaural_forward.1} parent=0 // pred_fallthru
    _
  // Predicated region
  $region14: #{binaural_forward.1} parent=0 // pred_check
    _
  $region15: #{binaural_forward.1} parent=0 // pred_check_branch
    %18 = sbr.rel (0) target = $region17
  $region16: #{binaural_forward.1} parent=0 // pred_region
    _
  $region17: #{binaural_forward.1} parent=0 // pred_fallthru
    _
  // Predicated region
  $region18: #{binaural_forward.1} parent=0 // pred_check
    _
  $region19: #{binaural_forward.1} parent=0 // pred_check_branch
    %20 = sbr.rel (0) target = $region21
  $region20: #{binaural_forward.1} parent=0 // pred_region
    _
  $region21: #{binaural_forward.1} parent=0 // pred_fallthru
    _
  %v21 = vld [vmem:[%s0] sm:$0xff]
  %v22 = vld [vmem:[%s1] sm:$0xff]
  %v23 = vld [vmem:[%s1 + $0x8] sm:$0xff]
  %v24 = vld [vmem:[%s1 + $0x10] sm:$0xff]
  %v25 = vld [vmem:[%s1 + $0x18] sm:$0xff]
  %v26 = vld [vmem:[%s1 + $0x20] sm:$0xff]
  %v27 = vld [vmem:[%s1 + $0x28] sm:$0xff]
  %v28 = vld [vmem:[%s1 + $0x30] sm:$0xff]
  %v29 = vld [vmem:[%s1 + $0x38] sm:$0xff]
  %v30 = vld [vmem:[%s1 + $0x40] sm:$0xff]
  %v31 = vld [vmem:[%s1 + $0x48] sm:$0xff]
  %v32 = vld [vmem:[%s1 + $0x50] sm:$0xff]
  %v33 = vld [vmem:[%s1 + $0x58] sm:$0xff]
  %v34 = vld [vmem:[%s1 + $0x60] sm:$0xff]
  %v35 = vld [vmem:[%s1 + $0x68] sm:$0xff]
  %v36 = vld [vmem:[%s1 + $0x70] sm:$0xff]
  %v37 = vld [vmem:[%s1 + $0x78] sm:$0xff]
  %v38 = vld [vmem:[%s1 + $0x80] sm:$0xff]
  %v39 = vld [vmem:[%s1 + $0x88] sm:$0xff]
  %v40 = vld [vmem:[%s1 + $0x90] sm:$0xff]
  %v41 = vld [vmem:[%s1 + $0x98] sm:$0xff]
  %v42 = vld [vmem:[%s1 + $0xa0] sm:$0xff]
  %v43 = vld [vmem:[%s1 + $0xa8] sm:$0xff]
  %v44 = vld [vmem:[%s1 + $0xb0] sm:$0xff]
  %v45 = vld [vmem:[%s1 + $0xb8] sm:$0xff]
  %v46 = vld [vmem:[%s1 + $0xc0] sm:$0xff]
  %v47 = vld [vmem:[%s1 + $0xc8] sm:$0xff]
  %v48 = vld [vmem:[%s1 + $0xd0] sm:$0xff]
  %v49 = vld [vmem:[%s1 + $0xd8] sm:$0xff]
  %v50 = vld [vmem:[%s1 + $0xe0] sm:$0xff]
  %v51 = vld [vmem:[%s1 + $0xe8] sm:$0xff]
  %v52 = vld [vmem:[%s1 + $0xf0] sm:$0xff]
  %v53 = vld [vmem:[%s1 + $0xf8] sm:$0xff]
  %v54 = vld [vmem:[%s2] sm:$0x3]
  %v56 = vperm.slane %v54, 0
  %v57 = vperm.slane %v54, 1
  %60 = vmatpush.msra.mxu0 %v52
  %61 = vmatpush.msra.mxu0 %v50
  %62 = vmatpush.msra.mxu0 %v48
  %63 = vmatpush.msra.mxu0 %v46
  %64 = vmatpush.msra.mxu0 %v44
  %65 = vmatpush.msra.mxu0 %v42
  %66 = vmatpush.msra.mxu0 %v40
  %67 = vmatpush.msra.mxu0 %v38
  %68 = vmatpush.msra.mxu0 %v36
  %69 = vmatpush.msra.mxu0 %v34
  %70 = vmatpush.msra.mxu0 %v32
  %71 = vmatpush.msra.mxu0 %v30
  %72 = vmatpush.msra.mxu0 %v28
  %73 = vmatpush.msra.mxu0 %v26
  %74 = vmatpush.msra.mxu0 %v24
  %75 = vmatpush.msra.mxu0 %v22
  %76 = vmatmul.f32.gmra.mxu0 %v21
  %v77 = vpop.f32.mrf.mxu0
  %v78 = vadd.f32 %v56, %v77
  %79 = vdwg.mxu0
  %80 = vmatpush.msra.mxu0 %v53
  %81 = vmatpush.msra.mxu0 %v51
  %82 = vmatpush.msra.mxu0 %v49
  %83 = vmatpush.msra.mxu0 %v47
  %84 = vmatpush.msra.mxu0 %v45
  %85 = vmatpush.msra.mxu0 %v43
  %86 = vmatpush.msra.mxu0 %v41
  %87 = vmatpush.msra.mxu0 %v39
  %88 = vmatpush.msra.mxu0 %v37
  %89 = vmatpush.msra.mxu0 %v35
  %90 = vmatpush.msra.mxu0 %v33
  %91 = vmatpush.msra.mxu0 %v31
  %92 = vmatpush.msra.mxu0 %v29
  %93 = vmatpush.msra.mxu0 %v27
  %94 = vmatpush.msra.mxu0 %v25
  %95 = vmatpush.msra.mxu0 %v23
  %96 = vmatmul.f32.gmra.mxu0 %v21
  %v97 = vpop.f32.mrf.mxu0
  %v98 = vadd.f32 %v57, %v97
  %99 = vdwg.mxu0
  %v100 = vsub.f32 0.0, %v78
  %v101 = vsub.f32 0.0, %v98
  %v102 = vmul.f32 %v100, 1.442695
  %v103 = vpow.pop %v102
  %v104 = vmul.f32 %v101, 1.442695
  %v105 = vpow.pop %v104
  %v106 = vadd.f32 %v103, 1.0
  %v107 = vadd.f32 %v105, 1.0
  %v108 = vrcp.pop %v106
  %v109 = vrcp.pop %v107
  %v110 = vld [vmem:[%s3] sm:$0xff]
  %v111 = vld [vmem:[%s3 + $0x8] sm:$0xff]
  %v112 = vld [vmem:[%s3 + $0x10] sm:$0xff]
  %v113 = vld [vmem:[%s3 + $0x18] sm:$0xff]
  %v114 = vld [vmem:[%s3 + $0x20] sm:$0xff]
  %v115 = vld [vmem:[%s3 + $0x28] sm:$0xff]
  %v116 = vld [vmem:[%s3 + $0x30] sm:$0xff]
  %v117 = vld [vmem:[%s3 + $0x38] sm:$0xff]
  %v118 = vld [vmem:[%s3 + $0x40] sm:$0xff]
  %v119 = vld [vmem:[%s3 + $0x48] sm:$0xff]
  %v120 = vld [vmem:[%s3 + $0x50] sm:$0xff]
  %v121 = vld [vmem:[%s3 + $0x58] sm:$0xff]
  %v122 = vld [vmem:[%s3 + $0x60] sm:$0xff]
  %v123 = vld [vmem:[%s3 + $0x68] sm:$0xff]
  %v124 = vld [vmem:[%s3 + $0x70] sm:$0xff]
  %v125 = vld [vmem:[%s3 + $0x78] sm:$0xff]
  %v126 = vld [vmem:[%s3 + $0x80] sm:$0xff]
  %v127 = vld [vmem:[%s3 + $0x88] sm:$0xff]
  %v128 = vld [vmem:[%s3 + $0x90] sm:$0xff]
  %v129 = vld [vmem:[%s3 + $0x98] sm:$0xff]
  %v130 = vld [vmem:[%s3 + $0xa0] sm:$0xff]
  %v131 = vld [vmem:[%s3 + $0xa8] sm:$0xff]
  %v132 = vld [vmem:[%s3 + $0xb0] sm:$0xff]
  %v133 = vld [vmem:[%s3 + $0xb8] sm:$0xff]
  %v134 = vld [vmem:[%s3 + $0xc0] sm:$0xff]
  %v135 = vld [vmem:[%s3 + $0xc8] sm:$0xff]
  %v136 = vld [vmem:[%s3 + $0xd0] sm:$0xff]
  %v137 = vld [vmem:[%s3 + $0xd8] sm:$0xff]
  %v138 = vld [vmem:[%s3 + $0xe0] sm:$0xff]
  %v139 = vld [vmem:[%s3 + $0xe8] sm:$0xff]
  %v140 = vld [vmem:[%s3 + $0xf0] sm:$0xff]
  %v141 = vld [vmem:[%s3 + $0xf8] sm:$0xff]
  %s142 = sld [smem:[#allocation2]]
  %v143 = vstv %s142
  %144 = vmatpush.msra.mxu0 %v125
  %145 = vmatpush.msra.mxu0 %v124
  %146 = vmatpush.msra.mxu0 %v123
  %147 = vmatpush.msra.mxu0 %v122
  %148 = vmatpush.msra.mxu0 %v121
  %149 = vmatpush.msra.mxu0 %v120
  %150 = vmatpush.msra.mxu0 %v119
  %151 = vmatpush.msra.mxu0 %v118
  %152 = vmatpush.msra.mxu0 %v117
  %153 = vmatpush.msra.mxu0 %v116
  %154 = vmatpush.msra.mxu0 %v115
  %155 = vmatpush.msra.mxu0 %v114
  %156 = vmatpush.msra.mxu0 %v113
  %157 = vmatpush.msra.mxu0 %v112
  %158 = vmatpush.msra.mxu0 %v111
  %159 = vmatpush.msra.mxu0 %v110
  %160 = vmatmul.f32.gmra.mxu0 %v108
  %v161 = vpop.f32.mrf.mxu0
  %v162 = vadd.f32 %v143, %v161
  %163 = vdwg.mxu0
  %164 = vmatpush.msra.mxu0 %v141
  %165 = vmatpush.msra.mxu0 %v140
  %166 = vmatpush.msra.mxu0 %v139
  %167 = vmatpush.msra.mxu0 %v138
  %168 = vmatpush.msra.mxu0 %v137
  %169 = vmatpush.msra.mxu0 %v136
  %170 = vmatpush.msra.mxu0 %v135
  %171 = vmatpush.msra.mxu0 %v134
  %172 = vmatpush.msra.mxu0 %v133
  %173 = vmatpush.msra.mxu0 %v132
  %174 = vmatpush.msra.mxu0 %v131
  %175 = vmatpush.msra.mxu0 %v130
  %176 = vmatpush.msra.mxu0 %v129
  %177 = vmatpush.msra.mxu0 %v128
  %178 = vmatpush.msra.mxu0 %v127
  %179 = vmatpush.msra.mxu0 %v126
  %180 = vmatmul.f32.gmra.mxu0 %v109
  %v181 = vpop.f32.mrf.mxu0
  %v182 = vadd.f32 %v162, %v181
  %183 = vdwg.mxu0
  %vm184 = vcmask 64512
  %185 = vst.msk [vmem:[%s5] sm:$0xff] %vm184, %v182
  // Predicated region
  $region22: #{binaural_forward.1} parent=0 // pred_check
    _
  $region23: #{binaural_forward.1} parent=0 // pred_check_branch
    %187 = sbr.rel (0) target = $region25
  $region24: #{binaural_forward.1} parent=0 // pred_region
    _
  $region25: #{binaural_forward.1} parent=0 // pred_fallthru
    _
  // Predicated region
  $region26: #{binaural_forward.1} parent=0 // pred_check
    _
  $region27: #{binaural_forward.1} parent=0 // pred_check_branch
    %189 = sbr.rel (0) target = $region29
  $region28: #{binaural_forward.1} parent=0 // pred_region
    _
  $region29: #{binaural_forward.1} parent=0 // pred_fallthru
    _

</llo_original>
